<compile_context>
chip_gen: v7x
topology: tpu7x:2x2x1
jax: 0.10.0
libtpu: 0.0.40
codegen_flags: <defaults>
</compile_context>

<pallas_src>
import jax
import jax.numpy as jnp
from jax.experimental import pallas as pl
from jax.experimental.pallas import tpu as pltpu


def conv3x3_relu_kernel(x_ref, w_ref, b_ref, o_ref):
    """One (batch n, row-tile i, lane-tile j) grid step.

    x_ref: (1, Hp, LIN)   height-padded, lane-aligned image of batch n
                          (block index constant over i and j -> DMA'd once
                          per image, double-buffered across n)
    w_ref: (KH, LIN, TL)  width-banded conv weights, lane tile j (resident)
    b_ref: (1, TL)        bias tiled across w_out, lane tile j (resident)
    o_ref: (1, TH, TL)    lane-dense output tile
    """
    KH = w_ref.shape[0]
    TH = o_ref.shape[1]
    TL = o_ref.shape[2]

    row0 = pl.program_id(1) * TH
    if TH % 8 == 0:
        row0 = pl.multiple_of(row0, 8)

    # One aligned (TH + KH - 1)-row window load; the KH taps come from static
    # in-register slices (sublane shifts on the XLU slot, which has slack)
    # instead of three separate misaligned VMEM loads.
    win = x_ref[0, pl.ds(row0, TH + KH - 1), :]           # (TH+KH-1, LIN)

    # Accumulator starts from the broadcast bias (folds the bias add in) and
    # stays float32 regardless of the compute dtype of x / w.
    acc = jnp.broadcast_to(b_ref[...], (TH, TL))
    for kh in range(KH):                                   # static KH-tap loop
        acc = acc + jnp.dot(win[kh:kh + TH, :], w_ref[kh, :, :],
                            preferred_element_type=jnp.float32)

    o_ref[0, :, :] = jnp.maximum(acc, 0.0).astype(o_ref.dtype)


def _banded_weights(weight, W, pad, lanes_in):
    """(Cout, Cin, KH, KW) -> (KH, lanes_in, W*Cout) width-banded weights.

    Width padding is folded in here:
      wmat[kh, w_in*Cin + ci, w_out*Cout + co] =
          weight[co, ci, kh, w_in - w_out + pad]   if 0 <= w_in - w_out + pad < KW
          0                                        otherwise
    The contraction dim is then zero-padded from W*Cin up to `lanes_in`.
    """
    Cout, Cin, KH, KW = weight.shape
    w_hwio = jnp.transpose(weight, (2, 3, 1, 0))                 # (KH, KW, Cin, Cout)
    kw = jnp.arange(W)[:, None] - jnp.arange(W)[None, :] + pad   # w_in - w_out + pad
    valid = (kw >= 0) & (kw < KW)
    wm = w_hwio[:, jnp.clip(kw, 0, KW - 1), :, :]                # (KH, W_in, W_out, Cin, Cout)
    wm = jnp.where(valid[None, :, :, None, None], wm, 0.0)
    wm = jnp.transpose(wm, (0, 1, 3, 2, 4))                      # (KH, W_in, Cin, W_out, Cout)
    wm = wm.reshape(KH, W * Cin, W * Cout)
    if lanes_in > W * Cin:
        wm = jnp.pad(wm, ((0, 0), (0, lanes_in - W * Cin), (0, 0)))
    return wm


def _pick_row_tile(H, N, max_tile=256):
    """Largest multiple-of-8 row tile dividing H (cap max_tile); keep >= 2
    programs on a parallel axis when N == 1 so both v7x TensorCores work."""
    if H % 8 != 0:
        return H
    cands = [t for t in range(8, min(H, max_tile) + 1, 8) if H % t == 0]
    th = max(cands)
    if N == 1 and H // th < 2:
        half = [t for t in cands if H // t >= 2]
        if half:
            th = max(half)
    return th


def _pick_lane_tile(lanes_out, KH, lanes_in, itemsize, budget_bytes=4 << 20):
    """Output-lane tile: full width while the resident banded weight is small,
    otherwise the largest multiple-of-128 divisor keeping one weight slice
    within ~budget_bytes (v7x VMEM is only 64 MiB)."""
    if lanes_out % 128 != 0:
        return lanes_out  # TODO(synk): pad lanes_out to 128 for odd W*Cout combos
    tl = lanes_out
    while (KH * lanes_in * tl * itemsize > budget_bytes
           and tl % 2 == 0 and (tl // 2) % 128 == 0):
        tl //= 2
    return tl


def conv_forward(x_nchw, weight, bias, *, kernel_size=3, stride=1,
                 compute_dtype=jnp.float32):
    """Equivalent of Conv(inp_dim, out_dim, 3, 1, bn=False, relu=True).forward.

    x_nchw : (N, Cin, H, W) float32
    weight : (Cout, Cin, KH, KW) float32 (PyTorch layout)
    bias   : (Cout,) float32
    compute_dtype : jnp.float32 (exact) or jnp.bfloat16 (halved DMA bytes,
                    f32 accumulation; loosen tolerances accordingly)
    returns: (N, Cout, H, W) in x_nchw.dtype
    """
    assert stride == 1, "module defaults: stride=1"
    assert kernel_size % 2 == 1
    N, Cin, H, W = x_nchw.shape
    Cout, Cin_w, KH, KW = weight.shape
    assert Cin_w == Cin and KH == kernel_size and KW == kernel_size
    pad = (kernel_size - 1) // 2
    Hp = H + 2 * pad

    lanes_in_raw = W * Cin
    lanes_in = ((lanes_in_raw + 127) // 128) * 128        # 128-lane aligned contraction
    lanes_out = W * Cout
    itemsize = 2 if compute_dtype == jnp.bfloat16 else 4

    TH = _pick_row_tile(H, N)
    TL = _pick_lane_tile(lanes_out, KH, lanes_in, itemsize)

    # NCHW -> (N, H, W*Cin) lane-flattened, then ONE pad fusing the 2-row
    # height halo with the lane alignment (no width-pad pass: width padding is
    # folded into the banded weights).
    # TODO(synk): if the surrounding model can stay NHWC end-to-end, this
    # transpose and the inverse on the way out are pure HBM round trips that
    # should be dropped / fused into neighbouring ops.
    x_rows = jnp.transpose(x_nchw, (0, 2, 3, 1)).reshape(N, H, lanes_in_raw)
    x_in = jnp.pad(x_rows, ((0, 0), (pad, pad), (0, lanes_in - lanes_in_raw)))
    x_in = x_in.astype(compute_dtype)

    wmat = _banded_weights(weight.astype(jnp.float32), W, pad,
                           lanes_in).astype(compute_dtype)
    b_row = jnp.tile(bias.astype(jnp.float32), W).reshape(1, lanes_out)

    grid = (N, H // TH, lanes_out // TL)
    out3 = pl.pallas_call(
        conv3x3_relu_kernel,
        out_shape=jax.ShapeDtypeStruct((N, H, lanes_out), x_nchw.dtype),
        grid_spec=pltpu.PrefetchScalarGridSpec(
            num_scalar_prefetch=0,
            grid=grid,
            in_specs=[
                # Full padded image of batch n; block index constant over
                # (i, j) -> fetched once per image, double-buffered across n.
                pl.BlockSpec((1, Hp, lanes_in), lambda n, i, j: (n, 0, 0)),
                # Banded weights / bias: small resident blocks per lane tile.
                pl.BlockSpec((KH, lanes_in, TL), lambda n, i, j: (0, 0, j)),
                pl.BlockSpec((1, TL), lambda n, i, j: (0, j)),
            ],
            out_specs=pl.BlockSpec((1, TH, TL), lambda n, i, j: (n, i, j)),
        ),
        compiler_params=pltpu.CompilerParams(
            dimension_semantics=("parallel", "parallel", "parallel"),
            # Working set is well under this; keep a cap that is safe on all
            # generations (v7x has 64 MiB physical VMEM per TensorCore).
            vmem_limit_bytes=32 * 1024 * 1024,
        ),
    )(x_in, wmat, b_row)

    out_nhwc = out3.reshape(N, H, W, Cout)
    return jnp.transpose(out_nhwc, (0, 3, 1, 2))           # NCHW (PyTorch parity)


if __name__ == "__main__":
    # Small shapes consistent with the module: N=2, Cin=4, H=W=16, Cout=8
    N, Cin, H, W = 2, 4, 16, 16
    Cout, K = 8, 3

    key = jax.random.PRNGKey(0)
    kx, kwt, kb = jax.random.split(key, 3)
    x = jax.random.normal(kx, (N, Cin, H, W), dtype=jnp.float32)
    weight = jax.random.normal(kwt, (Cout, Cin, K, K), dtype=jnp.float32) * 0.1
    bias = jax.random.normal(kb, (Cout,), dtype=jnp.float32) * 0.1

    # XLA conv reference (nn.Conv2d + bias + ReLU).
    ref = jax.lax.conv_general_dilated(
        x, weight, window_strides=(1, 1), padding=((1, 1), (1, 1)),
        dimension_numbers=("NCHW", "OIHW", "NCHW"),
    ) + bias.reshape(1, Cout, 1, 1)
    ref = jnp.maximum(ref, 0.0)

    # f32 path (exact parity with the PyTorch module).
    fwd = jax.jit(conv_forward)
    out = jax.block_until_ready(fwd(x, weight, bias))
    assert out.shape == (N, Cout, H, W)
    assert jnp.allclose(out, ref, atol=1e-4, rtol=1e-4), float(
        jnp.max(jnp.abs(out - ref)))

    # bf16 input/weight path (halved DMA bytes, f32 accumulation) — loose check.
    fwd_bf16 = jax.jit(lambda a, b, c: conv_forward(a, b, c,
                                                    compute_dtype=jnp.bfloat16))
    out_bf16 = jax.block_until_ready(fwd_bf16(x, weight, bias))
    assert out_bf16.shape == (N, Cout, H, W)
    assert bool(jnp.all(jnp.isfinite(out_bf16)))
    assert jnp.allclose(out_bf16, ref, atol=1e-1, rtol=1e-1), float(
        jnp.max(jnp.abs(out_bf16 - ref)))

    print("KERNEL_OK")
</pallas_src>

<mosaic_0001>
module attributes {stable_mosaic.version = 11 : i64} {
  func.func @conv3x3_relu_kernel(%arg0: i32, %arg1: i32, %arg2: i32, %arg3: memref<1x18x128xf32, #tpu.memory_space<vmem>>, %arg4: memref<3x128x128xf32, #tpu.memory_space<vmem>>, %arg5: memref<1x128xf32, #tpu.memory_space<vmem>>, %arg6: memref<1x16x128xf32, #tpu.memory_space<vmem>>) attributes {dimension_semantics = [#tpu.dimension_semantics<parallel>, #tpu.dimension_semantics<parallel>, #tpu.dimension_semantics<parallel>], iteration_bounds = array<i64: 2, 1, 1>, scalar_prefetch = 0 : i64, scratch_operands = 0 : i64, tpu.core_type = #tpu.core_type<tc>, window_params = [{transform_indices = @transform_0, window_bounds = array<i64: 1, 18, 128>}, {transform_indices = @transform_1, window_bounds = array<i64: 3, 128, 128>}, {transform_indices = @transform_2, window_bounds = array<i64: 1, 128>}, {transform_indices = @transform_3, window_bounds = array<i64: 1, 16, 128>}]} {
    %c16_i32 = arith.constant 16 : i32
    %0 = arith.muli %arg1, %c16_i32 : i32
    %1 = tpu.assume_multiple %0, 8 : i32
    %c0 = arith.constant 0 : index
    %2 = arith.index_cast %1 : i32 to index
    %c0_0 = arith.constant 0 : index
    %3 = vector.load %arg3[%c0, %2, %c0_0] : memref<1x18x128xf32, #tpu.memory_space<vmem>>, vector<1x18x128xf32>
    %4 = vector.shape_cast %3 : vector<1x18x128xf32> to vector<18x128xf32>
    %c0_1 = arith.constant 0 : index
    %c0_2 = arith.constant 0 : index
    %5 = vector.load %arg5[%c0_1, %c0_2] : memref<1x128xf32, #tpu.memory_space<vmem>>, vector<1x128xf32>
    %6 = vector.shape_cast %5 : vector<1x128xf32> to vector<1x128xf32>
    %7 = vector.broadcast %6 : vector<1x128xf32> to vector<16x128xf32>
    %8 = vector.extract_strided_slice %4 {offsets = [0, 0], sizes = [16, 128], strides = [1, 1]} : vector<18x128xf32> to vector<16x128xf32>
    %c0_3 = arith.constant 0 : index
    %c0_4 = arith.constant 0 : index
    %c0_5 = arith.constant 0 : index
    %9 = vector.load %arg4[%c0_3, %c0_4, %c0_5] : memref<3x128x128xf32, #tpu.memory_space<vmem>>, vector<1x128x128xf32>
    %10 = vector.shape_cast %9 : vector<1x128x128xf32> to vector<128x128xf32>
    %cst = arith.constant dense<0.000000e+00> : vector<16x128xf32>
    %11 = tpu.matmul %8, %10, %cst {dimension_numbers = #tpu.dot_dimension_numbers<[1], [0], [0], [1], [0, 0, 1, 1], [], []>} : vector<16x128xf32>, vector<128x128xf32>, vector<16x128xf32> -> vector<16x128xf32>
    %12 = arith.addf %7, %11 : vector<16x128xf32>
    %13 = vector.extract_strided_slice %4 {offsets = [1, 0], sizes = [16, 128], strides = [1, 1]} : vector<18x128xf32> to vector<16x128xf32>
    %c1 = arith.constant 1 : index
    %c0_6 = arith.constant 0 : index
    %c0_7 = arith.constant 0 : index
    %14 = vector.load %arg4[%c1, %c0_6, %c0_7] : memref<3x128x128xf32, #tpu.memory_space<vmem>>, vector<1x128x128xf32>
    %15 = vector.shape_cast %14 : vector<1x128x128xf32> to vector<128x128xf32>
    %cst_8 = arith.constant dense<0.000000e+00> : vector<16x128xf32>
    %16 = tpu.matmul %13, %15, %cst_8 {dimension_numbers = #tpu.dot_dimension_numbers<[1], [0], [0], [1], [0, 0, 1, 1], [], []>} : vector<16x128xf32>, vector<128x128xf32>, vector<16x128xf32> -> vector<16x128xf32>
    %17 = arith.addf %12, %16 : vector<16x128xf32>
    %18 = vector.extract_strided_slice %4 {offsets = [2, 0], sizes = [16, 128], strides = [1, 1]} : vector<18x128xf32> to vector<16x128xf32>
    %c2 = arith.constant 2 : index
    %c0_9 = arith.constant 0 : index
    %c0_10 = arith.constant 0 : index
    %19 = vector.load %arg4[%c2, %c0_9, %c0_10] : memref<3x128x128xf32, #tpu.memory_space<vmem>>, vector<1x128x128xf32>
    %20 = vector.shape_cast %19 : vector<1x128x128xf32> to vector<128x128xf32>
    %cst_11 = arith.constant dense<0.000000e+00> : vector<16x128xf32>
    %21 = tpu.matmul %18, %20, %cst_11 {dimension_numbers = #tpu.dot_dimension_numbers<[1], [0], [0], [1], [0, 0, 1, 1], [], []>} : vector<16x128xf32>, vector<128x128xf32>, vector<16x128xf32> -> vector<16x128xf32>
    %22 = arith.addf %17, %21 : vector<16x128xf32>
    %cst_12 = arith.constant 0.000000e+00 : f32
    %23 = vector.broadcast %cst_12 : f32 to vector<16x128xf32>
    %24 = arith.maximumf %22, %23 : vector<16x128xf32>
    %c0_13 = arith.constant 0 : index
    %c0_14 = arith.constant 0 : index
    %c0_15 = arith.constant 0 : index
    %25 = vector.load %arg6[%c0_13, %c0_14, %c0_15] : memref<1x16x128xf32, #tpu.memory_space<vmem>>, vector<1x16x128xf32>
    %26 = vector.shape_cast %25 : vector<1x16x128xf32> to vector<16x128xf32>
    %27 = vector.shape_cast %24 : vector<16x128xf32> to vector<1x16x128xf32>
    tpu.vector_store %arg6[%c0_13, %c0_14, %c0_15], %27 {strides = array<i32>} : memref<1x16x128xf32, #tpu.memory_space<vmem>>, vector<1x16x128xf32>,
    return
  }
  func.func @transform_0(%arg0: i32, %arg1: i32, %arg2: i32) -> (i32, i32, i32) {
    %c0_i32 = arith.constant 0 : i32
    %c0_i32_0 = arith.constant 0 : i32
    %c0_i32_1 = arith.constant 0 : i32
    return %arg0, %c0_i32, %c0_i32_0 : i32, i32, i32
  }
  func.func @transform_1(%arg0: i32, %arg1: i32, %arg2: i32) -> (i32, i32, i32) {
    %c0_i32 = arith.constant 0 : i32
    %c0_i32_0 = arith.constant 0 : i32
    %c0_i32_1 = arith.constant 0 : i32
    return %c0_i32, %c0_i32_0, %arg2 : i32, i32, i32
  }
  func.func @transform_2(%arg0: i32, %arg1: i32, %arg2: i32) -> (i32, i32) {
    %c0_i32 = arith.constant 0 : i32
    %c0_i32_0 = arith.constant 0 : i32
    return %c0_i32, %arg2 : i32, i32
  }
  func.func @transform_3(%arg0: i32, %arg1: i32, %arg2: i32) -> (i32, i32, i32) {
    %c0_i32 = arith.constant 0 : i32
    return %arg0, %arg1, %arg2 : i32, i32, i32
  }
}

</mosaic_0001>

<llo_original>
// kernel: tile.8
$region0: #{tile.8}
  #allocation0 [shape = 's32[1]{0}', space=sflag, size = 0x4, scoped, tag = 'scoped memory for tile.8']
  %s0 = inlined_call_operand.vmem [shape: f32[8], index: 0, kind: input, shape index: {}]
  %s1 = inlined_call_operand.vmem [shape: f32[16,8], index: 1, kind: output, shape index: {}]
  // Predicated region
  $region2: #{tile.8} parent=0 // pred_check
    _
  $region3: #{tile.8} parent=0 // pred_check_branch
    %3 = sbr.rel (0) target = $region5
  $region4: #{tile.8} parent=0 // pred_region
    _
  $region5: #{tile.8} parent=0 // pred_fallthru
    _
  %v4 = vld [vmem:[%s0] ss:$0 sm:$0xff]
  %5 = vst [vmem:[%s1] sm:$0xff] %v4
  %s6 = scalar_lea.vmem %s1, 8
  %7 = vst [vmem:[%s6] sm:$0xff] %v4

// kernel: tile.9
$region0: #{tile.9}
  %s0 = inlined_call_operand.vmem [shape: f32[16,8], index: 0, kind: input, shape index: {}]
  %s1 = inlined_call_operand.vmem [shape: f32[1,128], index: 1, kind: output, shape index: {}]
  $region1: #{tile.9} parent=0
    #allocation0 [shape = 'u8[4096]{0}', space=vmem, size = 0x1000, scoped, tag = 'scoped mem for output reshape']
    %v2 = vld [vmem:[%s0] sm:$0x1]
    %vm3 = vcmask 64512
    %4 = vst.msk [vmem:[#allocation0] sm:$0x1] %vm3, %v2
    %s5 = scalar_lea.vmem %s0, 15
    %v6 = vld [vmem:[%s5] sm:$0x1]
    %7 = vrot.lane.b32.xlu0 %v6, 120
    %v8 = vpop.permute.xlu0 %7
    %vm9 = vcmask 1048512
    %10 = vst.msk [vmem:[#allocation0] sm:$0x1] %vm9, %v8
    %s11 = scalar_lea.vmem %s0, 14
    %v12 = vld [vmem:[%s11] sm:$0x1]
    %13 = vrot.lane.b32.xlu0 %v12, 112
    %v14 = vpop.permute.xlu0 %13
    %vm15 = vcmask 982912
    %16 = vst.msk [vmem:[#allocation0] sm:$0x1] %vm15, %v14
    %s17 = scalar_lea.vmem %s0, 13
    %v18 = vld [vmem:[%s17] sm:$0x1]
    %19 = vrot.lane.b32.xlu0 %v18, 104
    %v20 = vpop.permute.xlu0 %19
    %vm21 = vcmask 917312
    %22 = vst.msk [vmem:[#allocation0] sm:$0x1] %vm21, %v20
    %s23 = scalar_lea.vmem %s0, 12
    %v24 = vld [vmem:[%s23] sm:$0x1]
    %25 = vrot.lane.b32.xlu0 %v24, 96
    %v26 = vpop.permute.xlu0 %25
    %vm27 = vcmask 851712
    %28 = vst.msk [vmem:[#allocation0] sm:$0x1] %vm27, %v26
    %s29 = scalar_lea.vmem %s0, 11
    %v30 = vld [vmem:[%s29] sm:$0x1]
    %31 = vrot.lane.b32.xlu0 %v30, 88
    %v32 = vpop.permute.xlu0 %31
    %vm33 = vcmask 786112
    %34 = vst.msk [vmem:[#allocation0] sm:$0x1] %vm33, %v32
    %s35 = scalar_lea.vmem %s0, 10
    %v36 = vld [vmem:[%s35] sm:$0x1]
    %37 = vrot.lane.b32.xlu0 %v36, 80
    %v38 = vpop.permute.xlu0 %37
    %vm39 = vcmask 720512
    %40 = vst.msk [vmem:[#allocation0] sm:$0x1] %vm39, %v38
    %s41 = scalar_lea.vmem %s0, 9
    %v42 = vld [vmem:[%s41] sm:$0x1]
    %43 = vrot.lane.b32.xlu0 %v42, 72
    %v44 = vpop.permute.xlu0 %43
    %vm45 = vcmask 654912
    %46 = vst.msk [vmem:[#allocation0] sm:$0x1] %vm45, %v44
    %s47 = scalar_lea.vmem %s0, 8
    %v48 = vld [vmem:[%s47] sm:$0x1]
    %49 = vrot.lane.b32.xlu0 %v48, 64
    %v50 = vpop.permute.xlu0 %49
    %vm51 = vcmask 589312
    %52 = vst.msk [vmem:[#allocation0] sm:$0x1] %vm51, %v50
    %s53 = scalar_lea.vmem %s0, 7
    %v54 = vld [vmem:[%s53] sm:$0x1]
    %55 = vrot.lane.b32.xlu0 %v54, 56
    %v56 = vpop.permute.xlu0 %55
    %vm57 = vcmask 523712
    %58 = vst.msk [vmem:[#allocation0] sm:$0x1] %vm57, %v56
    %s59 = scalar_lea.vmem %s0, 6
    %v60 = vld [vmem:[%s59] sm:$0x1]
    %61 = vrot.lane.b32.xlu0 %v60, 48
    %v62 = vpop.permute.xlu0 %61
    %vm63 = vcmask 458112
    %64 = vst.msk [vmem:[#allocation0] sm:$0x1] %vm63, %v62
    %s65 = scalar_lea.vmem %s0, 5
    %v66 = vld [vmem:[%s65] sm:$0x1]
    %67 = vrot.lane.b32.xlu0 %v66, 40
    %v68 = vpop.permute.xlu0 %67
    %vm69 = vcmask 392512
    %70 = vst.msk [vmem:[#allocation0] sm:$0x1] %vm69, %v68
    %s71 = scalar_lea.vmem %s0, 4
    %v72 = vld [vmem:[%s71] sm:$0x1]
    %73 = vrot.lane.b32.xlu0 %v72, 32
    %v74 = vpop.permute.xlu0 %73
    %vm75 = vcmask 326912
    %76 = vst.msk [vmem:[#allocation0] sm:$0x1] %vm75, %v74
    %s77 = scalar_lea.vmem %s0, 3
    %v78 = vld [vmem:[%s77] sm:$0x1]
    %79 = vrot.lane.b32.xlu0 %v78, 24
    %v80 = vpop.permute.xlu0 %79
    %vm81 = vcmask 261312
    %82 = vst.msk [vmem:[#allocation0] sm:$0x1] %vm81, %v80
    %s83 = scalar_lea.vmem %s0, 2
    %v84 = vld [vmem:[%s83] sm:$0x1]
    %85 = vrot.lane.b32.xlu0 %v84, 16
    %v86 = vpop.permute.xlu0 %85
    %vm87 = vcmask 195712
    %88 = vst.msk [vmem:[#allocation0] sm:$0x1] %vm87, %v86
    %s89 = scalar_lea.vmem %s0, 1
    %v90 = vld [vmem:[%s89] sm:$0x1]
    %91 = vrot.lane.b32.xlu0 %v90, 8
    %v92 = vpop.permute.xlu0 %91
    %vm93 = vcmask 130112
    %94 = vst.msk [vmem:[#allocation0] sm:$0x1] %vm93, %v92
    %s96 = sshllo.u32 0, 1
    %v98 = vld [vmem:[#allocation0] sm:%s96]
    %s99 = sshllo.u32 0, 1
    %100 = vst [vmem:[%s1] sm:%s99] %v98

// kernel: conv_forward.1
$region0: #{conv_forward.1}
  #allocation0 [shape = 'u32[]', space=smem, size = 0x4, offset = 0x4, fixed_abs, tag = 'smem constant byte address 0x4 - core index']
  #allocation1 [shape = 'u32[144,128]{1,0:T(1,128)}', space=vmem, size = 0x12000, scoped, tag = 'internal scratch']
  %s0 = inlined_call_operand.vmem [shape: f32[2,18,128], index: 0, kind: input, shape index: {}]
  %s1 = inlined_call_operand.vmem [shape: f32[3,128,128], index: 1, kind: input, shape index: {}]
  %s2 = inlined_call_operand.vmem [shape: f32[1,128], index: 2, kind: input, shape index: {}]
  %s3 = inlined_call_operand.vmem [shape: f32[2,16,128], index: 3, kind: output, shape index: {}]
  %s4 = sld [smem:[#allocation0]]
  $region45: #{conv_forward.1} parent=0
    _
  %s6 = ssub.s32 1, %s4
  %s7 = scalar_select 0, %s6, %s4
  loop: start=0, step=1, limit=4
  $region2: #{conv_forward.1} parent=0 // loop_pre_header
    _
  $region3: #{conv_forward.1} parent=0 // loop_header
    %s9 = sphi 0, %s13
    %p10 = scmp.ge.s32.totalorder %s9, 4
    %s16 = sphi 0, %s35
    %s17 = sphi 0, %s31
    %s18 = sphi 0, %s27
    %s19 = sphi 0, %s16
    %s20 = sphi 0, %s17
    %s21 = sphi 0, %s18
    %s22 = sphi 0, %s19
    %s23 = sphi 0, %s20
    %s24 = sphi 0, %s21
    %s38 = sphi 0, %s40
    %s41 = sphi 0, %s38
    %s42 = sphi 0, %s41
    %s58 = sphi 0, %s42
    %s64 = sphi 0, %s66
    %s67 = sphi 0, %s64
    %s68 = sphi 0, %s67
    %s84 = sphi 0, %s68
    %s90 = sphi 0, %s92
    %s93 = sphi 0, %s90
    %s94 = sphi 0, %s93
    %s110 = sphi 0, %s94
    %s120 = sphi 0, %s122
    %s123 = sphi 0, %s120
    %s124 = sphi 0, %s123
    %s140 = sphi 0, %s124
  $region4: #{conv_forward.1} parent=0 // loop_header_branch
    %12 = sbr.rel (%p10) target = $region8
  $region5: #{conv_forward.1} parent=0 // loop_body
    %s14 = ssub.s32 %s9, 1
    %s15 = ssub.s32 %s9, 2
    %s25 = sadd.s32 1, %s18
    %p26 = scmp.ge.s32.totalorder %s25, 1
    %s27 = scalar_select %p26, 0, %s25
    %s28 = sadd.s32 1, %s17
    %s29 = scalar_select %p26, %s28, %s17
    %p30 = scmp.ge.s32.totalorder %s29, 1
    %s31 = scalar_select %p30, 0, %s29
    %s32 = sadd.s32 1, %s16
    %s33 = scalar_select %p30, %s32, %s16
    %p34 = scmp.ge.s32.totalorder %s33, 2
    %s35 = scalar_select %p34, 0, %s33
    %s36 = ssub.s32 %s16, %s35
    %p37 = scmp.eq.s32.totalorder %s36, 0
    %s39 = sadd.s32 %s38, 1
    %s40 = scalar_select %p37, %s38, %s39
    %p43 = pneg %p37
    %p44 = scmp.eq.s32.totalorder %s9, 1
    %p45 = por %p43, %p44
    %p46 = scmp.ne.s32.totalorder %s38, %s41
    %p47 = scmp.eq.s32.totalorder %s9, 0
    %p48 = por %p46, %p47
    %p49 = scmp.ne.s32.totalorder %s38, %s41
    %p50 = scmp.eq.s32.totalorder %s14, 1
    %p51 = por %p49, %p50
    %p52 = scmp.ne.s32.totalorder %s41, %s42
    %p53 = scmp.eq.s32.totalorder %s14, 0
    %p54 = por %p52, %p53
    %p55 = scmp.ne.s32.totalorder %s41, %s42
    %p56 = scmp.eq.s32.totalorder %s15, 1
    %p57 = por %p55, %p56
    %p59 = scmp.ne.s32.totalorder %s42, %s58
    %p60 = scmp.eq.s32.totalorder %s15, 0
    %p61 = por %p59, %p60
    %s62 = ssub.s32 %s18, %s27
    %p63 = scmp.eq.s32.totalorder %s62, 0
    %s65 = sadd.s32 %s64, 1
    %s66 = scalar_select %p63, %s64, %s65
    %p69 = pneg %p63
    %p70 = scmp.eq.s32.totalorder %s9, 1
    %p71 = por %p69, %p70
    %p72 = scmp.ne.s32.totalorder %s64, %s67
    %p73 = scmp.eq.s32.totalorder %s9, 0
    %p74 = por %p72, %p73
    %p75 = scmp.ne.s32.totalorder %s64, %s67
    %p76 = scmp.eq.s32.totalorder %s14, 1
    %p77 = por %p75, %p76
    %p78 = scmp.ne.s32.totalorder %s67, %s68
    %p79 = scmp.eq.s32.totalorder %s14, 0
    %p80 = por %p78, %p79
    %p81 = scmp.ne.s32.totalorder %s67, %s68
    %p82 = scmp.eq.s32.totalorder %s15, 1
    %p83 = por %p81, %p82
    %p85 = scmp.ne.s32.totalorder %s68, %s84
    %p86 = scmp.eq.s32.totalorder %s15, 0
    %p87 = por %p85, %p86
    %s88 = ssub.s32 %s18, %s27
    %p89 = scmp.eq.s32.totalorder %s88, 0
    %s91 = sadd.s32 %s90, 1
    %s92 = scalar_select %p89, %s90, %s91
    %p95 = pneg %p89
    %p96 = scmp.eq.s32.totalorder %s9, 1
    %p97 = por %p95, %p96
    %p98 = scmp.ne.s32.totalorder %s90, %s93
    %p99 = scmp.eq.s32.totalorder %s9, 0
    %p100 = por %p98, %p99
    %p101 = scmp.ne.s32.totalorder %s90, %s93
    %p102 = scmp.eq.s32.totalorder %s14, 1
    %p103 = por %p101, %p102
    %p104 = scmp.ne.s32.totalorder %s93, %s94
    %p105 = scmp.eq.s32.totalorder %s14, 0
    %p106 = por %p104, %p105
    %p107 = scmp.ne.s32.totalorder %s93, %s94
    %p108 = scmp.eq.s32.totalorder %s15, 1
    %p109 = por %p107, %p108
    %p111 = scmp.ne.s32.totalorder %s94, %s110
    %p112 = scmp.eq.s32.totalorder %s15, 0
    %p113 = por %p111, %p112
    %s114 = ssub.s32 %s16, %s35
    %s115 = ssub.s32 %s17, %s31
    %s116 = sor.u32 %s114, %s115
    %s117 = ssub.s32 %s18, %s27
    %s118 = sor.u32 %s116, %s117
    %p119 = scmp.eq.s32.totalorder %s118, 0
    %s121 = sadd.s32 %s120, 1
    %s122 = scalar_select %p119, %s120, %s121
    %p125 = pneg %p119
    %p126 = scmp.eq.s32.totalorder %s9, 1
    %p127 = por %p125, %p126
    %p128 = scmp.ne.s32.totalorder %s120, %s123
    %p129 = scmp.eq.s32.totalorder %s9, 0
    %p130 = por %p128, %p129
    %p131 = scmp.ne.s32.totalorder %s120, %s123
    %p132 = scmp.eq.s32.totalorder %s14, 1
    %p133 = por %p131, %p132
    %p134 = scmp.ne.s32.totalorder %s123, %s124
    %p135 = scmp.eq.s32.totalorder %s14, 0
    %p136 = por %p134, %p135
    %p137 = scmp.ne.s32.totalorder %s123, %s124
    %p138 = scmp.eq.s32.totalorder %s15, 1
    %p139 = por %p137, %p138
    %p141 = scmp.ne.s32.totalorder %s124, %s140
    %p142 = scmp.eq.s32.totalorder %s15, 0
    %p143 = por %p141, %p142
    %p144 = scmp.le.s32.totalorder 1, %s9
    %p145 = scmp.lt.s32.totalorder %s9, 3
    %p146 = pnand %p144, %p145
    %p147 = pneg %p146
    // Predicated region
    $region9: #{conv_forward.1} parent=5 // pred_check
      _
    $region10: #{conv_forward.1} parent=5 // pred_check_branch
      %149 = sbr.rel (%p146) target = $region12
    $region11: #{conv_forward.1} parent=5 // pred_region
      %s150 = ssub.s32 %s9, 1
      // Predicated region
      $region13: #{conv_forward.1} parent=11 // pred_check
        %p151 = pneg %p80
      $region14: #{conv_forward.1} parent=11 // pred_check_branch
        %153 = sbr.rel (%p151) target = $region16
      $region15: #{conv_forward.1} parent=11 // pred_region
        %p154 = scmp.lt.s32.totalorder %s21, 0
        %s155 = scalar_select %p154, %s21, 0
        %s156 = smul.addr %s155, 8
        %s157 = scalar_lea.vmem %s1, %s156
      $region16: #{conv_forward.1} parent=11 // pred_fallthru
        _
      // Predicated region
      $region17: #{conv_forward.1} parent=11 // pred_check
        %p158 = pneg %p106
      $region18: #{conv_forward.1} parent=11 // pred_check_branch
        %160 = sbr.rel (%p158) target = $region20
      $region19: #{conv_forward.1} parent=11 // pred_region
        %p161 = scmp.lt.s32.totalorder %s21, 0
        %s162 = scalar_select %p161, %s21, 0
        %s163 = scalar_lea.vmem %s2, %s162
      $region20: #{conv_forward.1} parent=11 // pred_fallthru
        _
    $region12: #{conv_forward.1} parent=5 // pred_fallthru
      _
    %p164 = scmp.lt.s32.totalorder %s9, 2
    // Predicated region
    $region21: #{conv_forward.1} parent=5 // pred_check
      %p165 = pneg %p164
    $region22: #{conv_forward.1} parent=5 // pred_check_branch
      %167 = sbr.rel (%p165) target = $region24
    $region23: #{conv_forward.1} parent=5 // pred_region
      // Predicated region
      $region25: #{conv_forward.1} parent=23 // pred_check
        %p168 = pneg %p48
      $region26: #{conv_forward.1} parent=23 // pred_check_branch
        %170 = sbr.rel (%p168) target = $region28
      $region27: #{conv_forward.1} parent=23 // pred_region
        %p171 = scmp.lt.s32.totalorder %s16, 1
        %s172 = scalar_select %p171, %s16, 1
        %s173 = smul.addr %s172, 3
        %s174 = smul.addr %s173, 8
        %s175 = scalar_lea.vmem %s0, %s174
      $region28: #{conv_forward.1} parent=23 // pred_fallthru
        _
    $region24: #{conv_forward.1} parent=5 // pred_fallthru
      _
    %p176 = scmp.le.s32.totalorder 1, %s9
    %p177 = scmp.lt.s32.totalorder %s9, 3
    %p178 = pnand %p176, %p177
    %p179 = pneg %p178
    // Predicated region
    $region29: #{conv_forward.1} parent=5 // pred_check
      _
    $region30: #{conv_forward.1} parent=5 // pred_check_branch
      %181 = sbr.rel (%p178) target = $region32
    $region31: #{conv_forward.1} parent=5 // pred_region
      %s182 = ssub.s32 %s9, 1
      %p183 = scmp.lt.s32.totalorder %s19, 1
      %s184 = scalar_select %p183, %s19, 1
      %s185 = smul.addr %s184, 3
      %s186 = smul.addr %s185, 8
      %s187 = scalar_lea.vmem %s0, %s186
      %p188 = pneg %p54
      %p189 = pneg %p51
      %p190 = scmp.lt.s32.totalorder %s21, 0
      %s191 = scalar_select %p190, %s21, 0
      %s192 = smul.addr %s191, 8
      %s193 = scalar_lea.vmem %s1, %s192
      %p194 = pneg %p80
      %p195 = pneg %p77
      %p196 = scmp.lt.s32.totalorder %s21, 0
      %s197 = scalar_select %p196, %s21, 0
      %s198 = scalar_lea.vmem %s2, %s197
      %p199 = pneg %p106
      %p200 = pneg %p103
      %p201 = pneg %p136
      %p202 = pneg %p133
      %s203 = smul.u32 2, %s20
      %p204 = scmp.lt.s32.totalorder %s19, 1
      %s205 = scalar_select %p204, %s19, 1
      %p206 = scmp.lt.s32.totalorder %s203, 1
      %s207 = scalar_select %p206, %s203, 1
      %p208 = scmp.lt.s32.totalorder %s21, 0
      %s209 = scalar_select %p208, %s21, 0
      %s210 = sadd.s32 %s209, %s207
      %s211 = smul.addr %s205, 2
      %s212 = sadd.s32 %s210, %s211
      %s213 = smul.addr %s212, 8
      %s214 = scalar_lea.vmem %s3, %s213
      %p215 = scmp.lt.s32.totalorder %s19, 1
      %s216 = scalar_select %p215, %s19, 1
      %s217 = smul.addr %s216, 3
      %s218 = smul.addr %s217, 8
      %s219 = scalar_lea.vmem %s0, %s218
      %p220 = scmp.lt.s32.totalorder %s21, 0
      %s221 = scalar_select %p220, %s21, 0
      %s222 = smul.addr %s221, 8
      %s223 = scalar_lea.vmem %s1, %s222
      %p224 = scmp.lt.s32.totalorder %s21, 0
      %s225 = scalar_select %p224, %s21, 0
      %s226 = scalar_lea.vmem %s2, %s225
      %s227 = smul.u32 2, %s20
      %p228 = scmp.lt.s32.totalorder %s19, 1
      %s229 = scalar_select %p228, %s19, 1
      %p230 = scmp.lt.s32.totalorder %s227, 1
      %s231 = scalar_select %p230, %s227, 1
      %p232 = scmp.lt.s32.totalorder %s21, 0
      %s233 = scalar_select %p232, %s21, 0
      %s234 = sadd.s32 %s233, %s231
      %s235 = smul.addr %s229, 2
      %s236 = sadd.s32 %s234, %s235
      %s237 = smul.addr %s236, 8
      %s238 = scalar_lea.vmem %s3, %s237
      %s239 = smul.u32 2, %s20
      %s240 = smul.u32 %s20, 16
      %s241 = scalar_lea.vmem %s219, %s240
      %v242 = vld [vmem:[%s241] sm:$0xff]
      %v243 = vld [vmem:[%s241 + $0x8] sm:$0xff]
      %v244 = vld [vmem:[%s241 + $0x10] sm:$0x3]
      %v245 = vld [vmem:[%s226] sm:$0x1]
      %v247 = vlaneseq
      %v248 = vshrl.u32 %v247, 7
      %v249 = vsub.s32 0, %v248
      %v250 = vrot.slane %v245, %v249
      %v252 = vld [vmem:[%s223] sm:$0xff]
      %v253 = vld [vmem:[%s223 + $0x8] sm:$0xff]
      %v254 = vld [vmem:[%s223 + $0x10] sm:$0xff]
      %v255 = vld [vmem:[%s223 + $0x18] sm:$0xff]
      %v256 = vld [vmem:[%s223 + $0x20] sm:$0xff]
      %v257 = vld [vmem:[%s223 + $0x28] sm:$0xff]
      %v258 = vld [vmem:[%s223 + $0x30] sm:$0xff]
      %v259 = vld [vmem:[%s223 + $0x38] sm:$0xff]
      %v260 = vld [vmem:[%s223 + $0x40] sm:$0xff]
      %v261 = vld [vmem:[%s223 + $0x48] sm:$0xff]
      %v262 = vld [vmem:[%s223 + $0x50] sm:$0xff]
      %v263 = vld [vmem:[%s223 + $0x58] sm:$0xff]
      %v264 = vld [vmem:[%s223 + $0x60] sm:$0xff]
      %v265 = vld [vmem:[%s223 + $0x68] sm:$0xff]
      %v266 = vld [vmem:[%s223 + $0x70] sm:$0xff]
      %v267 = vld [vmem:[%s223 + $0x78] sm:$0xff]
      %268 = vmatprep.subr.mxu0 0.0
      %269 = vmatpush1.msra.mxu0 %v252
      %270 = vmatprep.subr.mxu0 0.0
      %271 = vmatpush1.msra.mxu0 %v253
      %272 = vmatprep.subr.mxu0 0.0
      %273 = vmatpush1.msra.mxu0 %v254
      %274 = vmatprep.subr.mxu0 0.0
      %275 = vmatpush1.msra.mxu0 %v255
      %276 = vmatprep.subr.mxu0 0.0
      %277 = vmatpush1.msra.mxu0 %v256
      %278 = vmatprep.subr.mxu0 0.0
      %279 = vmatpush1.msra.mxu0 %v257
      %280 = vmatprep.subr.mxu0 0.0
      %281 = vmatpush1.msra.mxu0 %v258
      %282 = vmatprep.subr.mxu0 0.0
      %283 = vmatpush1.msra.mxu0 %v259
      %284 = vmatprep.subr.mxu0 0.0
      %285 = vmatpush1.msra.mxu0 %v260
      %286 = vmatprep.subr.mxu0 0.0
      %287 = vmatpush1.msra.mxu0 %v261
      %288 = vmatprep.subr.mxu0 0.0
      %289 = vmatpush1.msra.mxu0 %v262
      %290 = vmatprep.subr.mxu0 0.0
      %291 = vmatpush1.msra.mxu0 %v263
      %292 = vmatprep.subr.mxu0 0.0
      %293 = vmatpush1.msra.mxu0 %v264
      %294 = vmatprep.subr.mxu0 0.0
      %295 = vmatpush1.msra.mxu0 %v265
      %296 = vmatprep.subr.mxu0 0.0
      %297 = vmatpush1.msra.mxu0 %v266
      %298 = vmatprep.subr.mxu0 0.0
      %299 = vmatpush1.msra.mxu0 %v267
      %300 = vmatprep.subr.mxu0 0.0
      %301 = vmatpush1.msra.mxu0 0.0
      %302 = vmatprep.subr.mxu0 0.0
      %303 = vmatpush1.msra.mxu0 0.0
      %304 = vmatprep.subr.mxu0 0.0
      %305 = vmatpush1.msra.mxu0 0.0
      %306 = vmatprep.subr.mxu0 0.0
      %307 = vmatpush1.msra.mxu0 0.0
      %308 = vmatprep.subr.mxu0 0.0
      %309 = vmatpush1.msra.mxu0 0.0
      %310 = vmatprep.subr.mxu0 0.0
      %311 = vmatpush1.msra.mxu0 0.0
      %312 = vmatprep.subr.mxu0 0.0
      %313 = vmatpush1.msra.mxu0 0.0
      %314 = vmatprep.subr.mxu0 0.0
      %315 = vmatpush1.msra.mxu0 0.0
      %316 = vmatprep.subr.mxu0 0.0
      %317 = vmatpush1.msra.mxu0 0.0
      %318 = vmatprep.subr.mxu0 0.0
      %319 = vmatpush1.msra.mxu0 0.0
      %320 = vmatprep.subr.mxu0 0.0
      %321 = vmatpush1.msra.mxu0 0.0
      %322 = vmatprep.subr.mxu0 0.0
      %323 = vmatpush1.msra.mxu0 0.0
      %324 = vmatprep.subr.mxu0 0.0
      %325 = vmatpush1.msra.mxu0 0.0
      %326 = vmatprep.subr.mxu0 0.0
      %327 = vmatpush1.msra.mxu0 0.0
      %328 = vmatprep.subr.mxu0 0.0
      %329 = vmatpush1.msra.mxu0 0.0
      %330 = vmatprep.subr.mxu0 0.0
      %331 = vmatpush1.msra.mxu0 0.0
      %332 = vmatprep.mubr.f32.mxu0 0.0
      %333 = vmatmul.mubr.f32.gmra.mrb[0].mxu0 %v242
      %v334 = vpop.f32.mrb[0].mxu0
      %v335 = vadd.f32 0.0, %v334
      %v336 = vpop.f32.mrb[0].mxu0
      %337 = vmatprep.mubr.f32.mxu0 0.0
      %338 = vmatmul.mubr.f32.gmra.mrb[0].mxu0 %v243
      %v339 = vpop.f32.mrb[0].mxu0
      %v340 = vadd.f32 0.0, %v339
      %v341 = vpop.f32.mrb[0].mxu0
      %342 = vdwg.mxu0
      %v343 = vadd.f32 %v250, %v335
      %v344 = vadd.f32 %v250, %v340
      %s345 = scalar_lea.vmem %s223, 128
      %v346 = vld [vmem:[%s345] sm:$0xff]
      %v347 = vld [vmem:[%s345 + $0x8] sm:$0xff]
      %v348 = vld [vmem:[%s345 + $0x10] sm:$0xff]
      %v349 = vld [vmem:[%s345 + $0x18] sm:$0xff]
      %v350 = vld [vmem:[%s345 + $0x20] sm:$0xff]
      %v351 = vld [vmem:[%s345 + $0x28] sm:$0xff]
      %v352 = vld [vmem:[%s345 + $0x30] sm:$0xff]
      %v353 = vld [vmem:[%s345 + $0x38] sm:$0xff]
      %v354 = vld [vmem:[%s345 + $0x40] sm:$0xff]
      %v355 = vld [vmem:[%s345 + $0x48] sm:$0xff]
      %v356 = vld [vmem:[%s345 + $0x50] sm:$0xff]
      %v357 = vld [vmem:[%s345 + $0x58] sm:$0xff]
      %v358 = vld [vmem:[%s345 + $0x60] sm:$0xff]
      %v359 = vld [vmem:[%s345 + $0x68] sm:$0xff]
      %v360 = vld [vmem:[%s345 + $0x70] sm:$0xff]
      %v361 = vld [vmem:[%s345 + $0x78] sm:$0xff]
      %vm365 = vcmask 1046528
      %v366 = vrot.slane %v242, 1
      %v367 = vrot.slane %v243, 1
      %v368 = vsel %vm365, %v366, %v367
      %v369 = vrot.slane %v244, 1
      %v370 = vsel %vm365, %v367, %v369
      %373 = vmatprep.subr.mxu0 0.0
      %374 = vmatpush1.msra.mxu0 %v346
      %375 = vmatprep.subr.mxu0 0.0
      %376 = vmatpush1.msra.mxu0 %v347
      %377 = vmatprep.subr.mxu0 0.0
      %378 = vmatpush1.msra.mxu0 %v348
      %379 = vmatprep.subr.mxu0 0.0
      %380 = vmatpush1.msra.mxu0 %v349
      %381 = vmatprep.subr.mxu0 0.0
      %382 = vmatpush1.msra.mxu0 %v350
      %383 = vmatprep.subr.mxu0 0.0
      %384 = vmatpush1.msra.mxu0 %v351
      %385 = vmatprep.subr.mxu0 0.0
      %386 = vmatpush1.msra.mxu0 %v352
      %387 = vmatprep.subr.mxu0 0.0
      %388 = vmatpush1.msra.mxu0 %v353
      %389 = vmatprep.subr.mxu0 0.0
      %390 = vmatpush1.msra.mxu0 %v354
      %391 = vmatprep.subr.mxu0 0.0
      %392 = vmatpush1.msra.mxu0 %v355
      %393 = vmatprep.subr.mxu0 0.0
      %394 = vmatpush1.msra.mxu0 %v356
      %395 = vmatprep.subr.mxu0 0.0
      %396 = vmatpush1.msra.mxu0 %v357
      %397 = vmatprep.subr.mxu0 0.0
      %398 = vmatpush1.msra.mxu0 %v358
      %399 = vmatprep.subr.mxu0 0.0
      %400 = vmatpush1.msra.mxu0 %v359
      %401 = vmatprep.subr.mxu0 0.0
      %402 = vmatpush1.msra.mxu0 %v360
      %403 = vmatprep.subr.mxu0 0.0
      %404 = vmatpush1.msra.mxu0 %v361
      %405 = vmatprep.subr.mxu0 0.0
      %406 = vmatpush1.msra.mxu0 0.0
      %407 = vmatprep.subr.mxu0 0.0
      %408 = vmatpush1.msra.mxu0 0.0
      %409 = vmatprep.subr.mxu0 0.0
      %410 = vmatpush1.msra.mxu0 0.0
      %411 = vmatprep.subr.mxu0 0.0
      %412 = vmatpush1.msra.mxu0 0.0
      %413 = vmatprep.subr.mxu0 0.0
      %414 = vmatpush1.msra.mxu0 0.0
      %415 = vmatprep.subr.mxu0 0.0
      %416 = vmatpush1.msra.mxu0 0.0
      %417 = vmatprep.subr.mxu0 0.0
      %418 = vmatpush1.msra.mxu0 0.0
      %419 = vmatprep.subr.mxu0 0.0
      %420 = vmatpush1.msra.mxu0 0.0
      %421 = vmatprep.subr.mxu0 0.0
      %422 = vmatpush1.msra.mxu0 0.0
      %423 = vmatprep.subr.mxu0 0.0
      %424 = vmatpush1.msra.mxu0 0.0
      %425 = vmatprep.subr.mxu0 0.0
      %426 = vmatpush1.msra.mxu0 0.0
      %427 = vmatprep.subr.mxu0 0.0
      %428 = vmatpush1.msra.mxu0 0.0
      %429 = vmatprep.subr.mxu0 0.0
      %430 = vmatpush1.msra.mxu0 0.0
      %431 = vmatprep.subr.mxu0 0.0
      %432 = vmatpush1.msra.mxu0 0.0
      %433 = vmatprep.subr.mxu0 0.0
      %434 = vmatpush1.msra.mxu0 0.0
      %435 = vmatprep.subr.mxu0 0.0
      %436 = vmatpush1.msra.mxu0 0.0
      %437 = vmatprep.mubr.f32.mxu0 0.0
      %438 = vmatmul.mubr.f32.gmra.mrb[0].mxu0 %v368
      %v439 = vpop.f32.mrb[0].mxu0
      %v440 = vadd.f32 0.0, %v439
      %v441 = vpop.f32.mrb[0].mxu0
      %442 = vmatprep.mubr.f32.mxu0 0.0
      %443 = vmatmul.mubr.f32.gmra.mrb[0].mxu0 %v370
      %v444 = vpop.f32.mrb[0].mxu0
      %v445 = vadd.f32 0.0, %v444
      %v446 = vpop.f32.mrb[0].mxu0
      %447 = vdwg.mxu0
      %v448 = vadd.f32 %v343, %v440
      %v449 = vadd.f32 %v344, %v445
      %s450 = scalar_lea.vmem %s223, 256
      %v451 = vld [vmem:[%s450] sm:$0xff]
      %v452 = vld [vmem:[%s450 + $0x8] sm:$0xff]
      %v453 = vld [vmem:[%s450 + $0x10] sm:$0xff]
      %v454 = vld [vmem:[%s450 + $0x18] sm:$0xff]
      %v455 = vld [vmem:[%s450 + $0x20] sm:$0xff]
      %v456 = vld [vmem:[%s450 + $0x28] sm:$0xff]
      %v457 = vld [vmem:[%s450 + $0x30] sm:$0xff]
      %v458 = vld [vmem:[%s450 + $0x38] sm:$0xff]
      %v459 = vld [vmem:[%s450 + $0x40] sm:$0xff]
      %v460 = vld [vmem:[%s450 + $0x48] sm:$0xff]
      %v461 = vld [vmem:[%s450 + $0x50] sm:$0xff]
      %v462 = vld [vmem:[%s450 + $0x58] sm:$0xff]
      %v463 = vld [vmem:[%s450 + $0x60] sm:$0xff]
      %v464 = vld [vmem:[%s450 + $0x68] sm:$0xff]
      %v465 = vld [vmem:[%s450 + $0x70] sm:$0xff]
      %v466 = vld [vmem:[%s450 + $0x78] sm:$0xff]
      %vm467 = vcmask 1045504
      %v468 = vrot.slane %v242, 2
      %v469 = vrot.slane %v243, 2
      %v470 = vsel %vm467, %v468, %v469
      %v471 = vrot.slane %v244, 2
      %v472 = vsel %vm467, %v469, %v471
      %475 = vmatprep.subr.mxu0 0.0
      %476 = vmatpush1.msra.mxu0 %v451
      %477 = vmatprep.subr.mxu0 0.0
      %478 = vmatpush1.msra.mxu0 %v452
      %479 = vmatprep.subr.mxu0 0.0
      %480 = vmatpush1.msra.mxu0 %v453
      %481 = vmatprep.subr.mxu0 0.0
      %482 = vmatpush1.msra.mxu0 %v454
      %483 = vmatprep.subr.mxu0 0.0
      %484 = vmatpush1.msra.mxu0 %v455
      %485 = vmatprep.subr.mxu0 0.0
      %486 = vmatpush1.msra.mxu0 %v456
      %487 = vmatprep.subr.mxu0 0.0
      %488 = vmatpush1.msra.mxu0 %v457
      %489 = vmatprep.subr.mxu0 0.0
      %490 = vmatpush1.msra.mxu0 %v458
      %491 = vmatprep.subr.mxu0 0.0
      %492 = vmatpush1.msra.mxu0 %v459
      %493 = vmatprep.subr.mxu0 0.0
      %494 = vmatpush1.msra.mxu0 %v460
      %495 = vmatprep.subr.mxu0 0.0
      %496 = vmatpush1.msra.mxu0 %v461
      %497 = vmatprep.subr.mxu0 0.0
      %498 = vmatpush1.msra.mxu0 %v462
      %499 = vmatprep.subr.mxu0 0.0
      %500 = vmatpush1.msra.mxu0 %v463
      %501 = vmatprep.subr.mxu0 0.0
      %502 = vmatpush1.msra.mxu0 %v464
      %503 = vmatprep.subr.mxu0 0.0
      %504 = vmatpush1.msra.mxu0 %v465
      %505 = vmatprep.subr.mxu0 0.0
      %506 = vmatpush1.msra.mxu0 %v466
      %507 = vmatprep.subr.mxu0 0.0
      %508 = vmatpush1.msra.mxu0 0.0
      %509 = vmatprep.subr.mxu0 0.0
      %510 = vmatpush1.msra.mxu0 0.0
      %511 = vmatprep.subr.mxu0 0.0
      %512 = vmatpush1.msra.mxu0 0.0
      %513 = vmatprep.subr.mxu0 0.0
      %514 = vmatpush1.msra.mxu0 0.0
      %515 = vmatprep.subr.mxu0 0.0
      %516 = vmatpush1.msra.mxu0 0.0
      %517 = vmatprep.subr.mxu0 0.0
      %518 = vmatpush1.msra.mxu0 0.0
      %519 = vmatprep.subr.mxu0 0.0
      %520 = vmatpush1.msra.mxu0 0.0
      %521 = vmatprep.subr.mxu0 0.0
      %522 = vmatpush1.msra.mxu0 0.0
      %523 = vmatprep.subr.mxu0 0.0
      %524 = vmatpush1.msra.mxu0 0.0
      %525 = vmatprep.subr.mxu0 0.0
      %526 = vmatpush1.msra.mxu0 0.0
      %527 = vmatprep.subr.mxu0 0.0
      %528 = vmatpush1.msra.mxu0 0.0
      %529 = vmatprep.subr.mxu0 0.0
      %530 = vmatpush1.msra.mxu0 0.0
      %531 = vmatprep.subr.mxu0 0.0
      %532 = vmatpush1.msra.mxu0 0.0
      %533 = vmatprep.subr.mxu0 0.0
      %534 = vmatpush1.msra.mxu0 0.0
      %535 = vmatprep.subr.mxu0 0.0
      %536 = vmatpush1.msra.mxu0 0.0
      %537 = vmatprep.subr.mxu0 0.0
      %538 = vmatpush1.msra.mxu0 0.0
      %539 = vmatprep.mubr.f32.mxu0 0.0
      %540 = vmatmul.mubr.f32.gmra.mrb[0].mxu0 %v470
      %v541 = vpop.f32.mrb[0].mxu0
      %v542 = vadd.f32 0.0, %v541
      %v543 = vpop.f32.mrb[0].mxu0
      %544 = vmatprep.mubr.f32.mxu0 0.0
      %545 = vmatmul.mubr.f32.gmra.mrb[0].mxu0 %v472
      %v546 = vpop.f32.mrb[0].mxu0
      %v547 = vadd.f32 0.0, %v546
      %v548 = vpop.f32.mrb[0].mxu0
      %549 = vdwg.mxu0
      %v550 = vadd.f32 %v448, %v542
      %v551 = vadd.f32 %v449, %v547
      %v552 = vmax.f32 %v550, 0.0
      %v553 = vmax.f32 %v551, 0.0
      %554 = vst [vmem:[%s238] sm:$0xff] %v552
      %555 = vst [vmem:[%s238 + $0x8] sm:$0xff] %v553
      %s556 = smul.u32 2, %s20
      %p557 = scmp.lt.s32.totalorder %s19, 1
      %s558 = scalar_select %p557, %s19, 1
      %p559 = scmp.lt.s32.totalorder %s556, 1
      %s560 = scalar_select %p559, %s556, 1
      %p561 = scmp.lt.s32.totalorder %s21, 0
      %s562 = scalar_select %p561, %s21, 0
      %s563 = sadd.s32 %s562, %s560
      %s564 = smul.addr %s558, 2
      %s565 = sadd.s32 %s563, %s564
      %s566 = smul.addr %s565, 8
      %s567 = scalar_lea.vmem %s3, %s566
      // Predicated region
      $region33: #{conv_forward.1} parent=31 // pred_check
        %p568 = pneg %p133
      $region34: #{conv_forward.1} parent=31 // pred_check_branch
        %570 = sbr.rel (%p568) target = $region36
      $region35: #{conv_forward.1} parent=31 // pred_region
        %s571 = smul.u32 2, %s20
      $region36: #{conv_forward.1} parent=31 // pred_fallthru
        _
    $region32: #{conv_forward.1} parent=5 // pred_fallthru
      _
    %p572 = scmp.le.s32.totalorder 2, %s9
    // Predicated region
    $region37: #{conv_forward.1} parent=5 // pred_check
      %p573 = pneg %p572
    $region38: #{conv_forward.1} parent=5 // pred_check_branch
      %575 = sbr.rel (%p573) target = $region40
    $region39: #{conv_forward.1} parent=5 // pred_region
      %s576 = ssub.s32 %s9, 2
      // Predicated region
      $region41: #{conv_forward.1} parent=39 // pred_check
        %p577 = pneg %p139
      $region42: #{conv_forward.1} parent=39 // pred_check_branch
        %579 = sbr.rel (%p577) target = $region44
      $region43: #{conv_forward.1} parent=39 // pred_region
        %s580 = smul.u32 2, %s23
        %p581 = scmp.lt.s32.totalorder %s22, 1
        %s582 = scalar_select %p581, %s22, 1
        %p583 = scmp.lt.s32.totalorder %s580, 1
        %s584 = scalar_select %p583, %s580, 1
        %p585 = scmp.lt.s32.totalorder %s24, 0
        %s586 = scalar_select %p585, %s24, 0
        %s587 = sadd.s32 %s586, %s584
        %s588 = smul.addr %s582, 2
        %s589 = sadd.s32 %s587, %s588
        %s590 = smul.addr %s589, 8
        %s591 = scalar_lea.vmem %s3, %s590
      $region44: #{conv_forward.1} parent=39 // pred_fallthru
        _
    $region40: #{conv_forward.1} parent=5 // pred_fallthru
      _
  $region6: #{conv_forward.1} parent=0 // loop_footer
    %s13 = sadd.s32 1, %s9
  $region7: #{conv_forward.1} parent=0 // loop_footer_branch
    %8 = sbr.rel target = $region3
  $region8: #{conv_forward.1} parent=0 // loop_exit
    _

</llo_original>
